<compile_context>
chip_gen: v6e
topology: v6e:2x2x1
jax: 0.10.0
libtpu: 0.0.40
codegen_flags: <defaults>
</compile_context>

<pallas_src>
import math

import jax
import jax.numpy as jnp
from jax.experimental import pallas as pl
from jax.experimental.pallas import tpu as pltpu

_MASK_VALUE = -1e6  # d2l masked_softmax fill value


def _attn_kernel(max_vl_ref, min_vl_ref,          # scalar prefetch (SMEM)
                 vl_ref, q_ref, k_ref, v_ref,      # inputs (VMEM)
                 o_ref,                            # output (VMEM)
                 qs_sc, m_sc, l_sc, acc_sc):       # VMEM scratch
    """One (batch-tile, q-tile, k-tile) grid step of flash-style masked attention."""
    b = pl.program_id(0)
    kv = pl.program_id(2)
    nk = pl.num_programs(2)
    block_k = k_ref.shape[1]
    d = q_ref.shape[-1]

    @pl.when(kv == 0)
    def _init():
        # hoist q * (1/sqrt(d)) out of the K loop: done once per (batch, Q) tile
        qs_sc[...] = (q_ref[...] * (1.0 / math.sqrt(d))).astype(qs_sc.dtype)
        m_sc[...] = jnp.full(m_sc.shape, -jnp.inf, dtype=jnp.float32)
        l_sc[...] = jnp.zeros(l_sc.shape, dtype=jnp.float32)
        acc_sc[...] = jnp.zeros(acc_sc.shape, dtype=jnp.float32)

    k_start = kv * block_k
    max_vl = max_vl_ref[b]                          # largest valid_len in this batch tile
    min_vl = min_vl_ref[b]                          # smallest valid_len in this batch tile
    tile_active = k_start < max_vl                  # some row attends to this K tile
    tile_fully_valid = (k_start + block_k) <= min_vl  # no masking needed in this tile

    def _update(apply_mask):
        q = qs_sc[...]
        k = k_ref[...]
        v = v_ref[...]
        # scores = q @ k^T contracting on D, batched on dim 0 (no explicit transpose),
        # native-dtype MXU operands, f32 accumulation.
        s = jax.lax.dot_general(
            q, k, dimension_numbers=(((2,), (2,)), ((0,), (0,))),
            preferred_element_type=jnp.float32)               # (bb, bq, bk)
        if apply_mask:
            vl = vl_ref[...]                                   # (bb, 1, 1) int32
            col = jax.lax.broadcasted_iota(jnp.int32, s.shape, 2) + k_start
            s = jnp.where(col < vl, s, jnp.float32(_MASK_VALUE))
        # online softmax update (f32)
        m_prev = m_sc[...]
        m_new = jnp.maximum(m_prev, jnp.max(s, axis=-1, keepdims=True))
        alpha = jnp.exp(m_prev - m_new)
        p = jnp.exp(s - m_new)
        l_sc[...] = alpha * l_sc[...] + jnp.sum(p, axis=-1, keepdims=True)
        pv = jax.lax.dot_general(
            p.astype(v.dtype), v,
            dimension_numbers=(((2,), (1,)), ((0,), (0,))),
            preferred_element_type=jnp.float32)                # (bb, bq, V)
        acc_sc[...] = alpha * acc_sc[...] + pv
        m_sc[...] = m_new

    # Fully-masked K tiles are skipped entirely (no matmul / exp work);
    # fully-valid tiles skip the iota+where masking.
    @pl.when(jnp.logical_and(tile_active, tile_fully_valid))
    def _body_unmasked():
        _update(apply_mask=False)

    @pl.when(jnp.logical_and(tile_active, jnp.logical_not(tile_fully_valid)))
    def _body_masked():
        _update(apply_mask=True)

    @pl.when(kv == nk - 1)
    def _finalize():
        # exact division: runs once per output block, approx reciprocal buys nothing
        o_ref[...] = (acc_sc[...] / l_sc[...]).astype(o_ref.dtype)


def _round_up(x, m):
    return ((x + m - 1) // m) * m


def dot_product_attention(queries, keys, values, valid_lens=None, *,
                          block_b=None, block_q=None, block_k=None,
                          kv_buffers=None):
    """queries (B,Q,D), keys (B,K,D), values (B,K,V), valid_lens (B,) int32 or None."""
    B, Q, D = queries.shape
    _, K, _ = keys.shape
    V = values.shape[-1]

    itemsize = jnp.dtype(queries.dtype).itemsize
    sub = {4: 8, 2: 16, 1: 32}.get(itemsize, 8)     # sublane packing multiple per dtype

    # ---- per-generation VMEM budget (v7x: 64 MiB/TC, v5e/v6e: 128 MiB) -------------
    try:
        vmem_cap = int(pltpu.get_tpu_info().vmem_capacity_bytes)
    except Exception:
        vmem_cap = 64 * 1024 * 1024                 # conservative (v7x-sized) fallback
    vmem_limit = min(int(vmem_cap * 0.9), 112 * 1024 * 1024)
    vmem_budget = min(int(vmem_cap * 0.7), 96 * 1024 * 1024)

    def _fits(bb, bq, bk):
        io = 2 * bb * (bq * D + bk * D + bk * V + bq * V) * itemsize  # double-buffered blocks
        sc = bb * bq * (D * itemsize + (V + 2) * 4)                   # q_scaled + m/l/acc
        return io + sc <= vmem_budget

    # ---- tile selection -------------------------------------------------------------
    if block_q is None:
        block_q = Q if Q <= 256 else 256            # bounds VMEM independent of seq len
    nq_est = _round_up(Q, block_q) // block_q
    if block_b is None:
        block_b = min(B, 8)
        # keep >= 2 parallel grid steps when possible so both v7x TensorCores get work
        if B >= 2 and nq_est * ((B + block_b - 1) // block_b) < 2:
            block_b = max(1, (B + 1) // 2)
    if block_k is None:
        if K <= 512:
            block_k = K                             # single K tile, no padding
        else:
            kp128 = _round_up(K, 128)
            block_k = 128
            for cand in (1024, 512, 256):           # largest 128-multiple tile that fits
                if kp128 % cand == 0 and _fits(block_b, block_q, cand):
                    block_k = cand
                    break
    # shrink until the working set fits the budget (batch tile, then K tile, then Q tile)
    while block_b > 1 and not _fits(block_b, block_q, block_k):
        block_b = max(1, block_b // 2)
    while block_k > 128 and not _fits(block_b, block_q, block_k):
        block_k = max(128, _round_up(block_k // 2, 128))
    while block_q > 2 * sub and not _fits(block_b, block_q, block_k):
        block_q = _round_up(max(sub, block_q // 2), sub)

    if block_q < Q:
        assert block_q % sub == 0, f"partial Q tile must be a multiple of {sub} for this dtype"
    if block_k < K:
        assert block_k % sub == 0, f"partial K tile must be a multiple of {sub} for this dtype"

    # ---- padding ----------------------------------------------------------------------
    Bp = _round_up(B, block_b)
    Qp = _round_up(Q, block_q)
    Kp = _round_up(K, block_k)

    if valid_lens is None:
        vl = jnp.full((B,), K, dtype=jnp.int32)     # padded key columns (>= K) stay masked
    else:
        vl = valid_lens.astype(jnp.int32)

    if Qp != Q:
        queries = jnp.pad(queries, ((0, 0), (0, Qp - Q), (0, 0)))
    if Kp != K:
        keys = jnp.pad(keys, ((0, 0), (0, Kp - K), (0, 0)))
        values = jnp.pad(values, ((0, 0), (0, Kp - K), (0, 0)))
    if Bp != B:
        pad = Bp - B
        queries = jnp.pad(queries, ((0, pad), (0, 0), (0, 0)))
        keys = jnp.pad(keys, ((0, pad), (0, 0), (0, 0)))
        values = jnp.pad(values, ((0, pad), (0, 0), (0, 0)))
        vl = jnp.pad(vl, (0, pad))                  # padded rows: valid_len = 0 -> skipped

    nb, nq, nk = Bp // block_b, Qp // block_q, Kp // block_k

    # per-batch-tile valid-length bounds for the in-kernel skip logic (scalar prefetch)
    vl_tiles = vl.reshape(nb, block_b)
    max_vl = jnp.max(vl_tiles, axis=1).astype(jnp.int32)
    min_vl = jnp.min(vl_tiles, axis=1).astype(jnp.int32)
    vl3 = vl.reshape(Bp, 1, 1)

    def _kv_spec(last_dim):
        idx = lambda b, q, k, mx, mn: (b, k, 0)
        shape = (block_b, block_k, last_dim)
        if kv_buffers is not None:                  # deeper K/V pipelining (e.g. v5e)
            return pl.BlockSpec(shape, idx, pipeline_mode=pl.Buffered(kv_buffers))
        return pl.BlockSpec(shape, idx)

    grid_spec = pltpu.PrefetchScalarGridSpec(
        num_scalar_prefetch=2,
        grid=(nb, nq, nk),
        in_specs=[
            pl.BlockSpec((block_b, 1, 1), lambda b, q, k, mx, mn: (b, 0, 0)),        # valid_lens
            pl.BlockSpec((block_b, block_q, D), lambda b, q, k, mx, mn: (b, q, 0)),  # q tile
            _kv_spec(D),                                                              # k tile
            _kv_spec(V),                                                              # v tile
        ],
        out_specs=pl.BlockSpec((block_b, block_q, V), lambda b, q, k, mx, mn: (b, q, 0)),
        scratch_shapes=[
            pltpu.VMEM((block_b, block_q, D), queries.dtype),   # scaled q (hoisted)
            pltpu.VMEM((block_b, block_q, 1), jnp.float32),     # running max
            pltpu.VMEM((block_b, block_q, 1), jnp.float32),     # running denom
            pltpu.VMEM((block_b, block_q, V), jnp.float32),     # running output
        ],
    )

    out = pl.pallas_call(
        _attn_kernel,
        out_shape=jax.ShapeDtypeStruct((Bp, Qp, V), queries.dtype),
        grid_spec=grid_spec,
        compiler_params=pltpu.CompilerParams(
            dimension_semantics=("parallel", "parallel", "arbitrary"),
            vmem_limit_bytes=vmem_limit,
        ),
    )(max_vl, min_vl, vl3, queries, keys, values)

    if Bp != B or Qp != Q:
        out = out[:B, :Q]
    return out


def _reference(queries, keys, values, valid_lens):
    d = queries.shape[-1]
    scores = jnp.einsum("bqd,bkd->bqk", queries, keys,
                        precision=jax.lax.Precision.HIGHEST) / math.sqrt(d)
    if valid_lens is not None:
        col = jnp.arange(scores.shape[-1])[None, None, :]
        mask = col < valid_lens[:, None, None]
        scores = jnp.where(mask, scores, _MASK_VALUE)
    w = jax.nn.softmax(scores, axis=-1)
    return jnp.einsum("bqk,bkv->bqv", w, values,
                      precision=jax.lax.Precision.HIGHEST)


if __name__ == "__main__":
    key = jax.random.PRNGKey(0)
    kq, kk, kv = jax.random.split(key, 3)

    # Test 1: d2l-style toy shapes, per-batch valid_lens (f32).
    B, Q, K, D, V = 2, 8, 8, 32, 32
    queries = jax.random.normal(kq, (B, Q, D), dtype=jnp.float32)
    keys = jax.random.normal(kk, (B, K, D), dtype=jnp.float32)
    values = jax.random.normal(kv, (B, K, V), dtype=jnp.float32)
    valid_lens = jnp.array([3, 6], dtype=jnp.int32)

    out = dot_product_attention(queries, keys, values, valid_lens)
    jax.block_until_ready(out)
    ref = _reference(queries, keys, values, valid_lens)
    assert out.shape == (B, Q, V)
    assert jnp.allclose(out, ref, atol=2e-3, rtol=2e-3), "mismatch vs reference (test 1)"

    # Test 2: valid_lens=None path.
    out2 = dot_product_attention(queries, keys, values, None)
    jax.block_until_ready(out2)
    ref2 = _reference(queries, keys, values, None)
    assert jnp.allclose(out2, ref2, atol=2e-3, rtol=2e-3), "mismatch (no mask, test 2)"

    # Test 3: Q tiling + K tiling + batch padding + masked-tile skip + partial masking.
    B3, Q3, K3, D3, V3 = 3, 256, 384, 64, 64
    k1, k2, k3 = jax.random.split(jax.random.PRNGKey(1), 3)
    q3 = jax.random.normal(k1, (B3, Q3, D3), dtype=jnp.float32)
    kk3 = jax.random.normal(k2, (B3, K3, D3), dtype=jnp.float32)
    vv3 = jax.random.normal(k3, (B3, K3, V3), dtype=jnp.float32)
    vl3 = jnp.array([5, 200, 384], dtype=jnp.int32)
    out3 = dot_product_attention(q3, kk3, vv3, vl3,
                                 block_b=2, block_q=128, block_k=128)
    jax.block_until_ready(out3)
    ref3 = _reference(q3, kk3, vv3, vl3)
    assert out3.shape == (B3, Q3, V3)
    assert jnp.allclose(out3, ref3, atol=2e-3, rtol=2e-3), "mismatch (flash path, test 3)"

    # Test 4: bf16 inputs (native-dtype MXU operands, f32 softmax/accumulation).
    qb = queries.astype(jnp.bfloat16)
    kb = keys.astype(jnp.bfloat16)
    vb = values.astype(jnp.bfloat16)
    out4 = dot_product_attention(qb, kb, vb, valid_lens)
    jax.block_until_ready(out4)
    ref4 = _reference(qb.astype(jnp.float32), kb.astype(jnp.float32),
                      vb.astype(jnp.float32), valid_lens)
    assert out4.dtype == jnp.bfloat16
    assert jnp.allclose(out4.astype(jnp.float32), ref4, atol=6e-2, rtol=6e-2), \
        "mismatch (bf16, test 4)"

    print("KERNEL_OK")
</pallas_src>

<mosaic_0001>
module attributes {stable_mosaic.version = 11 : i64} {
  func.func @_attn_kernel(%arg0: i32, %arg1: i32, %arg2: i32, %arg3: memref<2xi32, #tpu.memory_space<smem>>, %arg4: memref<2xi32, #tpu.memory_space<smem>>, %arg5: memref<1x1x1xi32, #tpu.memory_space<vmem>>, %arg6: memref<1x8x32xf32, #tpu.memory_space<vmem>>, %arg7: memref<1x8x32xf32, #tpu.memory_space<vmem>>, %arg8: memref<1x8x32xf32, #tpu.memory_space<vmem>>, %arg9: memref<1x8x32xf32, #tpu.memory_space<vmem>>, %arg10: memref<1x8x32xf32, #tpu.memory_space<vmem>>, %arg11: memref<1x8x1xf32, #tpu.memory_space<vmem>>, %arg12: memref<1x8x1xf32, #tpu.memory_space<vmem>>, %arg13: memref<1x8x32xf32, #tpu.memory_space<vmem>>) attributes {dimension_semantics = [#tpu.dimension_semantics<parallel>, #tpu.dimension_semantics<parallel>, #tpu.dimension_semantics<arbitrary>], iteration_bounds = array<i64: 2, 1, 1>, scalar_prefetch = 2 : i64, scratch_operands = 4 : i64, tpu.core_type = #tpu.core_type<tc>, window_params = [{transform_indices = @transform_0, window_bounds = array<i64: 1, 1, 1>}, {transform_indices = @transform_1, window_bounds = array<i64: 1, 8, 32>}, {transform_indices = @transform_2, window_bounds = array<i64: 1, 8, 32>}, {transform_indices = @transform_3, window_bounds = array<i64: 1, 8, 32>}, {transform_indices = @transform_4, window_bounds = array<i64: 1, 8, 32>}]} {
    %c0_i32 = arith.constant 0 : i32
    %0 = arith.cmpi eq, %arg2, %c0_i32 : i32
    %1 = arith.extui %0 : i1 to i32
    %c0_i32_0 = arith.constant 0 : i32
    %2 = arith.cmpi ne, %1, %c0_i32_0 : i32
    scf.if %2 {
      %c0 = arith.constant 0 : index
      %c0_6 = arith.constant 0 : index
      %c0_7 = arith.constant 0 : index
      %21 = vector.load %arg6[%c0, %c0_6, %c0_7] : memref<1x8x32xf32, #tpu.memory_space<vmem>>, vector<1x8x32xf32>
      %cst = arith.constant 0.176776692 : f32
      %22 = vector.broadcast %cst : f32 to vector<1x8x32xf32>
      %23 = arith.mulf %21, %22 : vector<1x8x32xf32>
      %c0_8 = arith.constant 0 : index
      %c0_9 = arith.constant 0 : index
      %c0_10 = arith.constant 0 : index
      %24 = vector.load %arg10[%c0_8, %c0_9, %c0_10] : memref<1x8x32xf32, #tpu.memory_space<vmem>>, vector<1x8x32xf32>
      tpu.vector_store %arg10[%c0_8, %c0_9, %c0_10], %23 {strides = array<i32>} : memref<1x8x32xf32, #tpu.memory_space<vmem>>, vector<1x8x32xf32>,
      %cst_11 = arith.constant 0xFF800000 : f32
      %25 = vector.broadcast %cst_11 : f32 to vector<1x8x1xf32>
      %c0_12 = arith.constant 0 : index
      %c0_13 = arith.constant 0 : index
      %c0_14 = arith.constant 0 : index
      %26 = vector.load %arg11[%c0_12, %c0_13, %c0_14] : memref<1x8x1xf32, #tpu.memory_space<vmem>>, vector<1x8x1xf32>
      tpu.vector_store %arg11[%c0_12, %c0_13, %c0_14], %25 {strides = array<i32>} : memref<1x8x1xf32, #tpu.memory_space<vmem>>, vector<1x8x1xf32>,
      %cst_15 = arith.constant 0.000000e+00 : f32
      %27 = vector.broadcast %cst_15 : f32 to vector<1x8x1xf32>
      %c0_16 = arith.constant 0 : index
      %c0_17 = arith.constant 0 : index
      %c0_18 = arith.constant 0 : index
      %28 = vector.load %arg12[%c0_16, %c0_17, %c0_18] : memref<1x8x1xf32, #tpu.memory_space<vmem>>, vector<1x8x1xf32>
      tpu.vector_store %arg12[%c0_16, %c0_17, %c0_18], %27 {strides = array<i32>} : memref<1x8x1xf32, #tpu.memory_space<vmem>>, vector<1x8x1xf32>,
      %cst_19 = arith.constant 0.000000e+00 : f32
      %29 = vector.broadcast %cst_19 : f32 to vector<1x8x32xf32>
      %c0_20 = arith.constant 0 : index
      %c0_21 = arith.constant 0 : index
      %c0_22 = arith.constant 0 : index
      %30 = vector.load %arg13[%c0_20, %c0_21, %c0_22] : memref<1x8x32xf32, #tpu.memory_space<vmem>>, vector<1x8x32xf32>
      tpu.vector_store %arg13[%c0_20, %c0_21, %c0_22], %29 {strides = array<i32>} : memref<1x8x32xf32, #tpu.memory_space<vmem>>, vector<1x8x32xf32>,
    } else {
    }
    %c8_i32 = arith.constant 8 : i32
    %3 = arith.muli %arg2, %c8_i32 : i32
    %4 = arith.index_cast %arg0 : i32 to index
    %5 = memref.load %arg3[%4] : memref<2xi32, #tpu.memory_space<smem>>
    %6 = arith.index_cast %arg0 : i32 to index
    %7 = memref.load %arg4[%6] : memref<2xi32, #tpu.memory_space<smem>>
    %8 = arith.cmpi slt, %3, %5 : i32
    %c8_i32_1 = arith.constant 8 : i32
    %9 = arith.addi %3, %c8_i32_1 : i32
    %10 = arith.cmpi sle, %9, %7 : i32
    %11 = arith.andi %8, %10 : i1
    %12 = arith.extui %11 : i1 to i32
    %c0_i32_2 = arith.constant 0 : i32
    %13 = arith.cmpi ne, %12, %c0_i32_2 : i32
    scf.if %13 {
      %c0 = arith.constant 0 : index
      %c0_6 = arith.constant 0 : index
      %c0_7 = arith.constant 0 : index
      %21 = vector.load %arg10[%c0, %c0_6, %c0_7] : memref<1x8x32xf32, #tpu.memory_space<vmem>>, vector<1x8x32xf32>
      %c0_8 = arith.constant 0 : index
      %c0_9 = arith.constant 0 : index
      %c0_10 = arith.constant 0 : index
      %22 = vector.load %arg7[%c0_8, %c0_9, %c0_10] : memref<1x8x32xf32, #tpu.memory_space<vmem>>, vector<1x8x32xf32>
      %c0_11 = arith.constant 0 : index
      %c0_12 = arith.constant 0 : index
      %c0_13 = arith.constant 0 : index
      %23 = vector.load %arg8[%c0_11, %c0_12, %c0_13] : memref<1x8x32xf32, #tpu.memory_space<vmem>>, vector<1x8x32xf32>
      %cst = arith.constant dense<0.000000e+00> : vector<1x8x8xf32>
      %24 = tpu.matmul %21, %22, %cst {dimension_numbers = #tpu.dot_dimension_numbers<[2], [2], [1], [1], [0, 0, 0, 1, 1, 1], [0], [0]>} : vector<1x8x32xf32>, vector<1x8x32xf32>, vector<1x8x8xf32> -> vector<1x8x8xf32>
      %c0_14 = arith.constant 0 : index
      %c0_15 = arith.constant 0 : index
      %c0_16 = arith.constant 0 : index
      %25 = vector.load %arg11[%c0_14, %c0_15, %c0_16] : memref<1x8x1xf32, #tpu.memory_space<vmem>>, vector<1x8x1xf32>
      %cst_17 = arith.constant dense<0xFF800000> : vector<1x8xf32>
      %26 = vector.multi_reduction <maximumf>, %24, %cst_17 [2] : vector<1x8x8xf32> to vector<1x8xf32>
      %27 = vector.shape_cast %26 : vector<1x8xf32> to vector<1x8x1xf32>
      %28 = arith.maximumf %25, %27 : vector<1x8x1xf32>
      %29 = arith.subf %25, %28 : vector<1x8x1xf32>
      %30 = math.exp %29 : vector<1x8x1xf32>
      %31 = vector.broadcast %28 : vector<1x8x1xf32> to vector<1x8x8xf32>
      %32 = arith.subf %24, %31 : vector<1x8x8xf32>
      %33 = math.exp %32 : vector<1x8x8xf32>
      %c0_18 = arith.constant 0 : index
      %c0_19 = arith.constant 0 : index
      %c0_20 = arith.constant 0 : index
      %34 = vector.load %arg12[%c0_18, %c0_19, %c0_20] : memref<1x8x1xf32, #tpu.memory_space<vmem>>, vector<1x8x1xf32>
      %35 = arith.mulf %30, %34 : vector<1x8x1xf32>
      %cst_21 = arith.constant dense<0.000000e+00> : vector<1x8xf32>
      %36 = vector.multi_reduction <add>, %33, %cst_21 [2] : vector<1x8x8xf32> to vector<1x8xf32>
      %37 = vector.shape_cast %36 : vector<1x8xf32> to vector<1x8x1xf32>
      %38 = arith.addf %35, %37 : vector<1x8x1xf32>
      %c0_22 = arith.constant 0 : index
      %c0_23 = arith.constant 0 : index
      %c0_24 = arith.constant 0 : index
      %39 = vector.load %arg12[%c0_22, %c0_23, %c0_24] : memref<1x8x1xf32, #tpu.memory_space<vmem>>, vector<1x8x1xf32>
      tpu.vector_store %arg12[%c0_22, %c0_23, %c0_24], %38 {strides = array<i32>} : memref<1x8x1xf32, #tpu.memory_space<vmem>>, vector<1x8x1xf32>,
      %cst_25 = arith.constant dense<0.000000e+00> : vector<1x8x32xf32>
      %40 = tpu.matmul %33, %23, %cst_25 {dimension_numbers = #tpu.dot_dimension_numbers<[2], [1], [1], [2], [0, 0, 0, 1, 1, 2], [0], [0]>} : vector<1x8x8xf32>, vector<1x8x32xf32>, vector<1x8x32xf32> -> vector<1x8x32xf32>
      %c0_26 = arith.constant 0 : index
      %c0_27 = arith.constant 0 : index
      %c0_28 = arith.constant 0 : index
      %41 = vector.load %arg13[%c0_26, %c0_27, %c0_28] : memref<1x8x32xf32, #tpu.memory_space<vmem>>, vector<1x8x32xf32>
      %42 = vector.broadcast %30 : vector<1x8x1xf32> to vector<1x8x32xf32>
      %43 = arith.mulf %42, %41 : vector<1x8x32xf32>
      %44 = arith.addf %43, %40 : vector<1x8x32xf32>
      %c0_29 = arith.constant 0 : index
      %c0_30 = arith.constant 0 : index
      %c0_31 = arith.constant 0 : index
      %45 = vector.load %arg13[%c0_29, %c0_30, %c0_31] : memref<1x8x32xf32, #tpu.memory_space<vmem>>, vector<1x8x32xf32>
      tpu.vector_store %arg13[%c0_29, %c0_30, %c0_31], %44 {strides = array<i32>} : memref<1x8x32xf32, #tpu.memory_space<vmem>>, vector<1x8x32xf32>,
      %c0_32 = arith.constant 0 : index
      %c0_33 = arith.constant 0 : index
      %c0_34 = arith.constant 0 : index
      %46 = vector.load %arg11[%c0_32, %c0_33, %c0_34] : memref<1x8x1xf32, #tpu.memory_space<vmem>>, vector<1x8x1xf32>
      tpu.vector_store %arg11[%c0_32, %c0_33, %c0_34], %28 {strides = array<i32>} : memref<1x8x1xf32, #tpu.memory_space<vmem>>, vector<1x8x1xf32>,
    } else {
    }
    %true = arith.constant true
    %14 = arith.xori %10, %true : i1
    %15 = arith.andi %8, %14 : i1
    %16 = arith.extui %15 : i1 to i32
    %c0_i32_3 = arith.constant 0 : i32
    %17 = arith.cmpi ne, %16, %c0_i32_3 : i32
    scf.if %17 {
      %c0 = arith.constant 0 : index
      %c0_6 = arith.constant 0 : index
      %c0_7 = arith.constant 0 : index
      %21 = vector.load %arg10[%c0, %c0_6, %c0_7] : memref<1x8x32xf32, #tpu.memory_space<vmem>>, vector<1x8x32xf32>
      %c0_8 = arith.constant 0 : index
      %c0_9 = arith.constant 0 : index
      %c0_10 = arith.constant 0 : index
      %22 = vector.load %arg7[%c0_8, %c0_9, %c0_10] : memref<1x8x32xf32, #tpu.memory_space<vmem>>, vector<1x8x32xf32>
      %c0_11 = arith.constant 0 : index
      %c0_12 = arith.constant 0 : index
      %c0_13 = arith.constant 0 : index
      %23 = vector.load %arg8[%c0_11, %c0_12, %c0_13] : memref<1x8x32xf32, #tpu.memory_space<vmem>>, vector<1x8x32xf32>
      %cst = arith.constant dense<0.000000e+00> : vector<1x8x8xf32>
      %24 = tpu.matmul %21, %22, %cst {dimension_numbers = #tpu.dot_dimension_numbers<[2], [2], [1], [1], [0, 0, 0, 1, 1, 1], [0], [0]>} : vector<1x8x32xf32>, vector<1x8x32xf32>, vector<1x8x8xf32> -> vector<1x8x8xf32>
      %c0_14 = arith.constant 0 : index
      %c0_15 = arith.constant 0 : index
      %c0_16 = arith.constant 0 : index
      %25 = vector.load %arg5[%c0_14, %c0_15, %c0_16] : memref<1x1x1xi32, #tpu.memory_space<vmem>>, vector<1x1x1xi32>
      %26 = tpu.iota {dimensions = array<i32: 2>} : vector<1x8x8xi32>
      %27 = vector.broadcast %3 : i32 to vector<1x8x8xi32>
      %28 = arith.addi %26, %27 : vector<1x8x8xi32>
      %29 = vector.broadcast %25 : vector<1x1x1xi32> to vector<1x8x8xi32>
      %30 = arith.cmpi slt, %28, %29 : vector<1x8x8xi32>
      %cst_17 = arith.constant -1.000000e+06 : f32
      %31 = vector.broadcast %cst_17 : f32 to vector<1x8x8xf32>
      %32 = arith.select %30, %24, %31 : vector<1x8x8xi1>, vector<1x8x8xf32>
      %c0_18 = arith.constant 0 : index
      %c0_19 = arith.constant 0 : index
      %c0_20 = arith.constant 0 : index
      %33 = vector.load %arg11[%c0_18, %c0_19, %c0_20] : memref<1x8x1xf32, #tpu.memory_space<vmem>>, vector<1x8x1xf32>
      %cst_21 = arith.constant dense<0xFF800000> : vector<1x8xf32>
      %34 = vector.multi_reduction <maximumf>, %32, %cst_21 [2] : vector<1x8x8xf32> to vector<1x8xf32>
      %35 = vector.shape_cast %34 : vector<1x8xf32> to vector<1x8x1xf32>
      %36 = arith.maximumf %33, %35 : vector<1x8x1xf32>
      %37 = arith.subf %33, %36 : vector<1x8x1xf32>
      %38 = math.exp %37 : vector<1x8x1xf32>
      %39 = vector.broadcast %36 : vector<1x8x1xf32> to vector<1x8x8xf32>
      %40 = arith.subf %32, %39 : vector<1x8x8xf32>
      %41 = math.exp %40 : vector<1x8x8xf32>
      %c0_22 = arith.constant 0 : index
      %c0_23 = arith.constant 0 : index
      %c0_24 = arith.constant 0 : index
      %42 = vector.load %arg12[%c0_22, %c0_23, %c0_24] : memref<1x8x1xf32, #tpu.memory_space<vmem>>, vector<1x8x1xf32>
      %43 = arith.mulf %38, %42 : vector<1x8x1xf32>
      %cst_25 = arith.constant dense<0.000000e+00> : vector<1x8xf32>
      %44 = vector.multi_reduction <add>, %41, %cst_25 [2] : vector<1x8x8xf32> to vector<1x8xf32>
      %45 = vector.shape_cast %44 : vector<1x8xf32> to vector<1x8x1xf32>
      %46 = arith.addf %43, %45 : vector<1x8x1xf32>
      %c0_26 = arith.constant 0 : index
      %c0_27 = arith.constant 0 : index
      %c0_28 = arith.constant 0 : index
      %47 = vector.load %arg12[%c0_26, %c0_27, %c0_28] : memref<1x8x1xf32, #tpu.memory_space<vmem>>, vector<1x8x1xf32>
      tpu.vector_store %arg12[%c0_26, %c0_27, %c0_28], %46 {strides = array<i32>} : memref<1x8x1xf32, #tpu.memory_space<vmem>>, vector<1x8x1xf32>,
      %cst_29 = arith.constant dense<0.000000e+00> : vector<1x8x32xf32>
      %48 = tpu.matmul %41, %23, %cst_29 {dimension_numbers = #tpu.dot_dimension_numbers<[2], [1], [1], [2], [0, 0, 0, 1, 1, 2], [0], [0]>} : vector<1x8x8xf32>, vector<1x8x32xf32>, vector<1x8x32xf32> -> vector<1x8x32xf32>
      %c0_30 = arith.constant 0 : index
      %c0_31 = arith.constant 0 : index
      %c0_32 = arith.constant 0 : index
      %49 = vector.load %arg13[%c0_30, %c0_31, %c0_32] : memref<1x8x32xf32, #tpu.memory_space<vmem>>, vector<1x8x32xf32>
      %50 = vector.broadcast %38 : vector<1x8x1xf32> to vector<1x8x32xf32>
      %51 = arith.mulf %50, %49 : vector<1x8x32xf32>
      %52 = arith.addf %51, %48 : vector<1x8x32xf32>
      %c0_33 = arith.constant 0 : index
      %c0_34 = arith.constant 0 : index
      %c0_35 = arith.constant 0 : index
      %53 = vector.load %arg13[%c0_33, %c0_34, %c0_35] : memref<1x8x32xf32, #tpu.memory_space<vmem>>, vector<1x8x32xf32>
      tpu.vector_store %arg13[%c0_33, %c0_34, %c0_35], %52 {strides = array<i32>} : memref<1x8x32xf32, #tpu.memory_space<vmem>>, vector<1x8x32xf32>,
      %c0_36 = arith.constant 0 : index
      %c0_37 = arith.constant 0 : index
      %c0_38 = arith.constant 0 : index
      %54 = vector.load %arg11[%c0_36, %c0_37, %c0_38] : memref<1x8x1xf32, #tpu.memory_space<vmem>>, vector<1x8x1xf32>
      tpu.vector_store %arg11[%c0_36, %c0_37, %c0_38], %36 {strides = array<i32>} : memref<1x8x1xf32, #tpu.memory_space<vmem>>, vector<1x8x1xf32>,
    } else {
    }
    %c0_i32_4 = arith.constant 0 : i32
    %18 = arith.cmpi eq, %arg2, %c0_i32_4 : i32
    %19 = arith.extui %18 : i1 to i32
    %c0_i32_5 = arith.constant 0 : i32
    %20 = arith.cmpi ne, %19, %c0_i32_5 : i32
    scf.if %20 {
      %c0 = arith.constant 0 : index
      %c0_6 = arith.constant 0 : index
      %c0_7 = arith.constant 0 : index
      %21 = vector.load %arg13[%c0, %c0_6, %c0_7] : memref<1x8x32xf32, #tpu.memory_space<vmem>>, vector<1x8x32xf32>
      %c0_8 = arith.constant 0 : index
      %c0_9 = arith.constant 0 : index
      %c0_10 = arith.constant 0 : index
      %22 = vector.load %arg12[%c0_8, %c0_9, %c0_10] : memref<1x8x1xf32, #tpu.memory_space<vmem>>, vector<1x8x1xf32>
      %23 = vector.broadcast %22 : vector<1x8x1xf32> to vector<1x8x32xf32>
      %24 = arith.divf %21, %23 : vector<1x8x32xf32>
      %c0_11 = arith.constant 0 : index
      %c0_12 = arith.constant 0 : index
      %c0_13 = arith.constant 0 : index
      %25 = vector.load %arg9[%c0_11, %c0_12, %c0_13] : memref<1x8x32xf32, #tpu.memory_space<vmem>>, vector<1x8x32xf32>
      tpu.vector_store %arg9[%c0_11, %c0_12, %c0_13], %24 {strides = array<i32>} : memref<1x8x32xf32, #tpu.memory_space<vmem>>, vector<1x8x32xf32>,
    } else {
    }
    return
  }
  func.func @transform_0(%arg0: i32, %arg1: i32, %arg2: i32, %arg3: memref<2xi32, #tpu.memory_space<smem>>, %arg4: memref<2xi32, #tpu.memory_space<smem>>) -> (i32, i32, i32) {
    %c0_i32 = arith.constant 0 : i32
    %c0_i32_0 = arith.constant 0 : i32
    %c0_i32_1 = arith.constant 0 : i32
    return %arg0, %c0_i32, %c0_i32_0 : i32, i32, i32
  }
  func.func @transform_1(%arg0: i32, %arg1: i32, %arg2: i32, %arg3: memref<2xi32, #tpu.memory_space<smem>>, %arg4: memref<2xi32, #tpu.memory_space<smem>>) -> (i32, i32, i32) {
    %c0_i32 = arith.constant 0 : i32
    %c0_i32_0 = arith.constant 0 : i32
    return %arg0, %arg1, %c0_i32 : i32, i32, i32
  }
  func.func @transform_2(%arg0: i32, %arg1: i32, %arg2: i32, %arg3: memref<2xi32, #tpu.memory_space<smem>>, %arg4: memref<2xi32, #tpu.memory_space<smem>>) -> (i32, i32, i32) {
    %c0_i32 = arith.constant 0 : i32
    %c0_i32_0 = arith.constant 0 : i32
    return %arg0, %arg2, %c0_i32 : i32, i32, i32
  }
  func.func @transform_3(%arg0: i32, %arg1: i32, %arg2: i32, %arg3: memref<2xi32, #tpu.memory_space<smem>>, %arg4: memref<2xi32, #tpu.memory_space<smem>>) -> (i32, i32, i32) {
    %c0_i32 = arith.constant 0 : i32
    %c0_i32_0 = arith.constant 0 : i32
    return %arg0, %arg2, %c0_i32 : i32, i32, i32
  }
  func.func @transform_4(%arg0: i32, %arg1: i32, %arg2: i32, %arg3: memref<2xi32, #tpu.memory_space<smem>>, %arg4: memref<2xi32, #tpu.memory_space<smem>>) -> (i32, i32, i32) {
    %c0_i32 = arith.constant 0 : i32
    %c0_i32_0 = arith.constant 0 : i32
    return %arg0, %arg1, %c0_i32 : i32, i32, i32
  }
}

</mosaic_0001>

<llo_original>
// kernel: tpu_custom_call.1
$region0: #{tpu_custom_call.1}
  #allocation0 [shape = 'u32[]', space=smem, size = 0x4, offset = 0x4, fixed_abs, tag = 'smem constant byte address 0x4 - core index']
  #allocation1 [shape = 'u32[144,128]{1,0:T(1,128)}', space=vmem, size = 0x12000, scoped, tag = 'internal scratch']
  #allocation2 [shape = 'f32[1,8,32]{2,1,0:T(8,128)}', space=vmem, size = 0x1000, scoped, tag = 'scratch operand']
  #allocation3 [shape = 'f32[1,8,1]{2,1,0:T(8,128)}', space=vmem, size = 0x1000, scoped, tag = 'scratch operand']
  #allocation4 [shape = 'f32[1,8,1]{2,1,0:T(8,128)}', space=vmem, size = 0x1000, scoped, tag = 'scratch operand']
  #allocation5 [shape = 'f32[1,8,32]{2,1,0:T(8,128)}', space=vmem, size = 0x1000, scoped, tag = 'scratch operand']
  #allocation6 [shape = 's32[1]{0}', space=sflag, size = 0x4, scoped, tag = 'scoped memory for tpu_custom_call.1']
  #allocation7 [shape = 'u8[512]{0}', space=smem, size = 0x200, scoped, tag = 'prefetched SMEM operand 0']
  #allocation8 [shape = 'u8[512]{0}', space=smem, size = 0x200, scoped, tag = 'prefetched SMEM operand 1']
  %s0 = inlined_call_operand.vmem [shape: s32[2], index: 0, kind: input, shape index: {}]
  %s1 = inlined_call_operand.vmem [shape: s32[2], index: 1, kind: input, shape index: {}]
  %s2 = inlined_call_operand.vmem [shape: s32[2,1,1], index: 2, kind: input, shape index: {}]
  %s3 = inlined_call_operand.hbm [shape: f32[2,8,32], index: 3, kind: input, shape index: {}]
  %s4 = inlined_call_operand.hbm [shape: f32[2,8,32], index: 4, kind: input, shape index: {}]
  %s5 = inlined_call_operand.hbm [shape: f32[2,8,32], index: 5, kind: input, shape index: {}]
  %s6 = inlined_call_operand.hbm [shape: f32[2,8,32], index: 6, kind: output, shape index: {}]
  %s7 = sld [smem:[#allocation0]]
  $region77: #{tpu_custom_call.1} parent=0
    _
  %s9 = ssub.s32 1, %s7
  %s10 = scalar_select 0, %s9, %s7
  %s11 = sshll.u32 %s0, 4
  %s12 = int_to_ptr.vmem [resolvable:$true] %s11
  %14 = dma.vmem_to_smem %s12, 16, [#allocation7], [#allocation6]
  %s15 = sshll.u32 %s1, 4
  %s16 = int_to_ptr.vmem [resolvable:$true] %s15
  %18 = dma.vmem_to_smem %s16, 16, [#allocation8], [#allocation6]
  %19 = dma.done [#allocation6], 32
  %20 = sfence
  $region1: #{tpu_custom_call.1} parent=0
    #allocation9 [shape = 'u8[8192]{0}', space=vmem, size = 0x2000, scoped, tag = 'input window, operand 3']
    #allocation10 [shape = 's32[2]{0}', space=sflag, size = 0x8, scoped, tag = 'scoped memory for tpu_custom_call.1']
    #allocation11 [shape = 's32[2]{0}', space=sflag, size = 0x8, scoped, tag = 'scoped memory for tpu_custom_call.1']
    #allocation12 [shape = 'u8[8192]{0}', space=vmem, size = 0x2000, scoped, tag = 'input window, operand 4']
    #allocation13 [shape = 's32[2]{0}', space=sflag, size = 0x8, scoped, tag = 'scoped memory for tpu_custom_call.1']
    #allocation14 [shape = 'u8[8192]{0}', space=vmem, size = 0x2000, scoped, tag = 'input window, operand 5']
    #allocation15 [shape = 'u8[8192]{0}', space=vmem, size = 0x2000, scoped, tag = 'output window, operand 0']
    %21 = vsyncpa [#allocation10], 0
    %s22 = scalar_lea.sflag [#allocation10], 1
    %23 = vsyncpa %s22, 0
    %24 = vsyncpa [#allocation13], 0
    %s25 = scalar_lea.sflag [#allocation13], 1
    %26 = vsyncpa %s25, 0
    %27 = vsyncpa [#allocation11], 0
    %s28 = scalar_lea.sflag [#allocation11], 1
    %29 = vsyncpa %s28, 0
    loop: start=0, step=1, limit=4
    $region2: #{tpu_custom_call.1} parent=1 // loop_pre_header
      _
    $region3: #{tpu_custom_call.1} parent=1 // loop_header
      %s31 = sphi 0, %s35
      %p32 = scmp.ge.s32.totalorder %s31, 4
      %s38 = sphi 0, %s57
      %s39 = sphi 0, %s53
      %s40 = sphi 0, %s49
      %s41 = sphi 0, %s38
      %s42 = sphi 0, %s39
      %s43 = sphi 0, %s40
      %s44 = sphi 0, %s41
      %s45 = sphi 0, %s42
      %s46 = sphi 0, %s43
      %s60 = sphi 0, %s62
      %s63 = sphi 0, %s60
      %s64 = sphi 0, %s63
      %s80 = sphi 0, %s64
      %s88 = sphi 0, %s90
      %s91 = sphi 0, %s88
      %s92 = sphi 0, %s91
      %s108 = sphi 0, %s92
      %s116 = sphi 0, %s118
      %s119 = sphi 0, %s116
      %s120 = sphi 0, %s119
      %s136 = sphi 0, %s120
      %s144 = sphi 0, %s146
      %s147 = sphi 0, %s144
      %s148 = sphi 0, %s147
      %s164 = sphi 0, %s148
      %s172 = sphi 0, %s174
      %s175 = sphi 0, %s172
      %s176 = sphi 0, %s175
      %s192 = sphi 0, %s176
    $region4: #{tpu_custom_call.1} parent=1 // loop_header_branch
      %34 = sbr.rel (%p32) target = $region8
    $region5: #{tpu_custom_call.1} parent=1 // loop_body
      %s36 = ssub.s32 %s31, 1
      %s37 = ssub.s32 %s31, 2
      %s47 = sadd.s32 1, %s40
      %p48 = scmp.ge.s32.totalorder %s47, 1
      %s49 = scalar_select %p48, 0, %s47
      %s50 = sadd.s32 1, %s39
      %s51 = scalar_select %p48, %s50, %s39
      %p52 = scmp.ge.s32.totalorder %s51, 1
      %s53 = scalar_select %p52, 0, %s51
      %s54 = sadd.s32 1, %s38
      %s55 = scalar_select %p52, %s54, %s38
      %p56 = scmp.ge.s32.totalorder %s55, 2
      %s57 = scalar_select %p56, 0, %s55
      %s58 = ssub.s32 %s38, %s57
      %p59 = scmp.eq.s32.totalorder %s58, 0
      %s61 = sadd.s32 %s60, 1
      %s62 = scalar_select %p59, %s60, %s61
      %p65 = pneg %p59
      %p66 = scmp.eq.s32.totalorder %s31, 1
      %p67 = por %p65, %p66
      %p68 = scmp.ne.s32.totalorder %s60, %s63
      %p69 = scmp.eq.s32.totalorder %s31, 0
      %p70 = por %p68, %p69
      %p71 = scmp.ne.s32.totalorder %s60, %s63
      %p72 = scmp.eq.s32.totalorder %s36, 1
      %p73 = por %p71, %p72
      %p74 = scmp.ne.s32.totalorder %s63, %s64
      %p75 = scmp.eq.s32.totalorder %s36, 0
      %p76 = por %p74, %p75
      %p77 = scmp.ne.s32.totalorder %s63, %s64
      %p78 = scmp.eq.s32.totalorder %s37, 1
      %p79 = por %p77, %p78
      %p81 = scmp.ne.s32.totalorder %s64, %s80
      %p82 = scmp.eq.s32.totalorder %s37, 0
      %p83 = por %p81, %p82
      %s84 = ssub.s32 %s38, %s57
      %s85 = ssub.s32 %s39, %s53
      %s86 = sor.u32 %s84, %s85
      %p87 = scmp.eq.s32.totalorder %s86, 0
      %s89 = sadd.s32 %s88, 1
      %s90 = scalar_select %p87, %s88, %s89
      %p93 = pneg %p87
      %p94 = scmp.eq.s32.totalorder %s31, 1
      %p95 = por %p93, %p94
      %p96 = scmp.ne.s32.totalorder %s88, %s91
      %p97 = scmp.eq.s32.totalorder %s31, 0
      %p98 = por %p96, %p97
      %p99 = scmp.ne.s32.totalorder %s88, %s91
      %p100 = scmp.eq.s32.totalorder %s36, 1
      %p101 = por %p99, %p100
      %p102 = scmp.ne.s32.totalorder %s91, %s92
      %p103 = scmp.eq.s32.totalorder %s36, 0
      %p104 = por %p102, %p103
      %p105 = scmp.ne.s32.totalorder %s91, %s92
      %p106 = scmp.eq.s32.totalorder %s37, 1
      %p107 = por %p105, %p106
      %p109 = scmp.ne.s32.totalorder %s92, %s108
      %p110 = scmp.eq.s32.totalorder %s37, 0
      %p111 = por %p109, %p110
      %s112 = ssub.s32 %s38, %s57
      %s113 = ssub.s32 %s40, %s49
      %s114 = sor.u32 %s112, %s113
      %p115 = scmp.eq.s32.totalorder %s114, 0
      %s117 = sadd.s32 %s116, 1
      %s118 = scalar_select %p115, %s116, %s117
      %p121 = pneg %p115
      %p122 = scmp.eq.s32.totalorder %s31, 1
      %p123 = por %p121, %p122
      %p124 = scmp.ne.s32.totalorder %s116, %s119
      %p125 = scmp.eq.s32.totalorder %s31, 0
      %p126 = por %p124, %p125
      %p127 = scmp.ne.s32.totalorder %s116, %s119
      %p128 = scmp.eq.s32.totalorder %s36, 1
      %p129 = por %p127, %p128
      %p130 = scmp.ne.s32.totalorder %s119, %s120
      %p131 = scmp.eq.s32.totalorder %s36, 0
      %p132 = por %p130, %p131
      %p133 = scmp.ne.s32.totalorder %s119, %s120
      %p134 = scmp.eq.s32.totalorder %s37, 1
      %p135 = por %p133, %p134
      %p137 = scmp.ne.s32.totalorder %s120, %s136
      %p138 = scmp.eq.s32.totalorder %s37, 0
      %p139 = por %p137, %p138
      %s140 = ssub.s32 %s38, %s57
      %s141 = ssub.s32 %s40, %s49
      %s142 = sor.u32 %s140, %s141
      %p143 = scmp.eq.s32.totalorder %s142, 0
      %s145 = sadd.s32 %s144, 1
      %s146 = scalar_select %p143, %s144, %s145
      %p149 = pneg %p143
      %p150 = scmp.eq.s32.totalorder %s31, 1
      %p151 = por %p149, %p150
      %p152 = scmp.ne.s32.totalorder %s144, %s147
      %p153 = scmp.eq.s32.totalorder %s31, 0
      %p154 = por %p152, %p153
      %p155 = scmp.ne.s32.totalorder %s144, %s147
      %p156 = scmp.eq.s32.totalorder %s36, 1
      %p157 = por %p155, %p156
      %p158 = scmp.ne.s32.totalorder %s147, %s148
      %p159 = scmp.eq.s32.totalorder %s36, 0
      %p160 = por %p158, %p159
      %p161 = scmp.ne.s32.totalorder %s147, %s148
      %p162 = scmp.eq.s32.totalorder %s37, 1
      %p163 = por %p161, %p162
      %p165 = scmp.ne.s32.totalorder %s148, %s164
      %p166 = scmp.eq.s32.totalorder %s37, 0
      %p167 = por %p165, %p166
      %s168 = ssub.s32 %s38, %s57
      %s169 = ssub.s32 %s39, %s53
      %s170 = sor.u32 %s168, %s169
      %p171 = scmp.eq.s32.totalorder %s170, 0
      %s173 = sadd.s32 %s172, 1
      %s174 = scalar_select %p171, %s172, %s173
      %p177 = pneg %p171
      %p178 = scmp.eq.s32.totalorder %s31, 1
      %p179 = por %p177, %p178
      %p180 = scmp.ne.s32.totalorder %s172, %s175
      %p181 = scmp.eq.s32.totalorder %s31, 0
      %p182 = por %p180, %p181
      %p183 = scmp.ne.s32.totalorder %s172, %s175
      %p184 = scmp.eq.s32.totalorder %s36, 1
      %p185 = por %p183, %p184
      %p186 = scmp.ne.s32.totalorder %s175, %s176
      %p187 = scmp.eq.s32.totalorder %s36, 0
      %p188 = por %p186, %p187
      %p189 = scmp.ne.s32.totalorder %s175, %s176
      %p190 = scmp.eq.s32.totalorder %s37, 1
      %p191 = por %p189, %p190
      %p193 = scmp.ne.s32.totalorder %s176, %s192
      %p194 = scmp.eq.s32.totalorder %s37, 0
      %p195 = por %p193, %p194
      %p196 = scmp.le.s32.totalorder 1, %s31
      %p197 = scmp.lt.s32.totalorder %s31, 3
      %p198 = pnand %p196, %p197
      %p199 = pneg %p198
      // Predicated region
      $region9: #{tpu_custom_call.1} parent=5 // pred_check
        _
      $region10: #{tpu_custom_call.1} parent=5 // pred_check_branch
        %201 = sbr.rel (%p198) target = $region12
      $region11: #{tpu_custom_call.1} parent=5 // pred_region
        %s202 = ssub.s32 %s31, 1
      $region12: #{tpu_custom_call.1} parent=5 // pred_fallthru
        _
      %p203 = scmp.lt.s32.totalorder %s31, 2
      // Predicated region
      $region13: #{tpu_custom_call.1} parent=5 // pred_check
        %p204 = pneg %p203
      $region14: #{tpu_custom_call.1} parent=5 // pred_check_branch
        %206 = sbr.rel (%p204) target = $region16
      $region15: #{tpu_custom_call.1} parent=5 // pred_region
        // Predicated region
        $region17: #{tpu_custom_call.1} parent=15 // pred_check
          %p207 = pneg %p70
        $region18: #{tpu_custom_call.1} parent=15 // pred_check_branch
          %209 = sbr.rel (%p207) target = $region20
        $region19: #{tpu_custom_call.1} parent=15 // pred_region
          %p210 = scmp.lt.s32.totalorder %s38, 1
          %s211 = scalar_select %p210, %s38, 1
          %s212 = scalar_lea.vmem %s2, %s211
        $region20: #{tpu_custom_call.1} parent=15 // pred_fallthru
          _
        // Predicated region
        $region21: #{tpu_custom_call.1} parent=15 // pred_check
          %p213 = pneg %p98
        $region22: #{tpu_custom_call.1} parent=15 // pred_check_branch
          %215 = sbr.rel (%p213) target = $region24
        $region23: #{tpu_custom_call.1} parent=15 // pred_region
          %s216 = sand.u32 %s88, 1
          %s217 = scalar_lea.sflag [#allocation10], %s216
          %s218 = sand.u32 %s88, 1
          %s219 = smul.addr %s218, 8
          %s220 = scalar_lea.vmem [#allocation9], %s219
          %s222 = ssub.s32 128, 128
          %223 = vsyncadd %s217, %s222
          %s224 = sadd.s32 %s39, %s38
          %s225 = smul.addr %s224, 128
          %s226 = scalar_lea.hbm %s3, %s225
          %s228 = sshll.u32 %s220, 4
          %s229 = int_to_ptr.vmem [resolvable:$true] %s228
          %231 = dma.hbm_to_vmem [thread:$0]  %s226, 128, %s229, %s217
        $region24: #{tpu_custom_call.1} parent=15 // pred_fallthru
          _
        // Predicated region
        $region25: #{tpu_custom_call.1} parent=15 // pred_check
          %p232 = pneg %p126
        $region26: #{tpu_custom_call.1} parent=15 // pred_check_branch
          %234 = sbr.rel (%p232) target = $region28
        $region27: #{tpu_custom_call.1} parent=15 // pred_region
          %s235 = sand.u32 %s31, 1
          %s236 = scalar_lea.sflag [#allocation13], %s235
          %s237 = sand.u32 %s116, 1
          %s238 = smul.addr %s237, 8
          %s239 = scalar_lea.vmem [#allocation12], %s238
          %s241 = ssub.s32 128, 128
          %242 = vsyncadd %s236, %s241
          %s243 = sadd.s32 %s40, %s38
          %s244 = smul.addr %s243, 128
          %s245 = scalar_lea.hbm %s4, %s244
          %s247 = sshll.u32 %s239, 4
          %s248 = int_to_ptr.vmem [resolvable:$true] %s247
          %250 = dma.hbm_to_vmem [thread:$0]  %s245, 128, %s248, %s236
        $region28: #{tpu_custom_call.1} parent=15 // pred_fallthru
          _
        // Predicated region
        $region29: #{tpu_custom_call.1} parent=15 // pred_check
          %p251 = pneg %p154
        $region30: #{tpu_custom_call.1} parent=15 // pred_check_branch
          %253 = sbr.rel (%p251) target = $region32
        $region31: #{tpu_custom_call.1} parent=15 // pred_region
          %s254 = sand.u32 %s31, 1
          %s255 = scalar_lea.sflag [#allocation13], %s254
          %s256 = sand.u32 %s144, 1
          %s257 = smul.addr %s256, 8
          %s258 = scalar_lea.vmem [#allocation14], %s257
          %s260 = ssub.s32 128, 128
          %261 = vsyncadd %s255, %s260
          %s262 = sadd.s32 %s40, %s38
          %s263 = smul.addr %s262, 128
          %s264 = scalar_lea.hbm %s5, %s263
          %s266 = sshll.u32 %s258, 4
          %s267 = int_to_ptr.vmem [resolvable:$true] %s266
          %269 = dma.hbm_to_vmem [thread:$0]  %s264, 128, %s267, %s255
        $region32: #{tpu_custom_call.1} parent=15 // pred_fallthru
          _
      $region16: #{tpu_custom_call.1} parent=5 // pred_fallthru
        _
      %p270 = scmp.le.s32.totalorder 1, %s31
      %p271 = scmp.lt.s32.totalorder %s31, 3
      %p272 = pnand %p270, %p271
      %p273 = pneg %p272
      // Predicated region
      $region33: #{tpu_custom_call.1} parent=5 // pred_check
        _
      $region34: #{tpu_custom_call.1} parent=5 // pred_check_branch
        %275 = sbr.rel (%p272) target = $region36
      $region35: #{tpu_custom_call.1} parent=5 // pred_region
        %s276 = ssub.s32 %s31, 1
        %s277 = sand.u32 %s91, 1
        %s278 = scalar_lea.sflag [#allocation10], %s277
        %s279 = sand.u32 %s91, 1
        %s280 = smul.addr %s279, 8
        %s281 = scalar_lea.vmem [#allocation9], %s280
        // Predicated region
        $region37: #{tpu_custom_call.1} parent=35 // pred_check
          %p282 = pneg %p104
        $region38: #{tpu_custom_call.1} parent=35 // pred_check_branch
          %284 = sbr.rel (%p282) target = $region40
        $region39: #{tpu_custom_call.1} parent=35 // pred_region
          %285 = dma.done %s278, 128
        $region40: #{tpu_custom_call.1} parent=35 // pred_fallthru
          _
        %s286 = sand.u32 %s36, 1
        %s287 = scalar_lea.sflag [#allocation13], %s286
        %s288 = sand.u32 %s119, 1
        %s289 = smul.addr %s288, 8
        %s290 = scalar_lea.vmem [#allocation12], %s289
        // Predicated region
        $region41: #{tpu_custom_call.1} parent=35 // pred_check
          %p291 = pneg %p132
        $region42: #{tpu_custom_call.1} parent=35 // pred_check_branch
          %293 = sbr.rel (%p291) target = $region44
        $region43: #{tpu_custom_call.1} parent=35 // pred_region
          %294 = dma.done %s287, 128
        $region44: #{tpu_custom_call.1} parent=35 // pred_fallthru
          _
        %s295 = sand.u32 %s36, 1
        %s296 = scalar_lea.sflag [#allocation13], %s295
        %s297 = sand.u32 %s147, 1
        %s298 = smul.addr %s297, 8
        %s299 = scalar_lea.vmem [#allocation14], %s298
        // Predicated region
        $region45: #{tpu_custom_call.1} parent=35 // pred_check
          %p300 = pneg %p160
        $region46: #{tpu_custom_call.1} parent=35 // pred_check_branch
          %302 = sbr.rel (%p300) target = $region48
        $region47: #{tpu_custom_call.1} parent=35 // pred_region
          %303 = dma.done %s296, 128
        $region48: #{tpu_custom_call.1} parent=35 // pred_fallthru
          _
        %p304 = scmp.lt.s32.totalorder %s41, 1
        %s305 = scalar_select %p304, %s41, 1
        %s306 = scalar_lea.vmem %s2, %s305
        %p307 = pneg %p76
        %p308 = pneg %p73
        %s309 = sand.u32 %s91, 1
        %s310 = scalar_lea.sflag [#allocation10], %s309
        %s311 = sand.u32 %s91, 1
        %s312 = smul.addr %s311, 8
        %s313 = scalar_lea.vmem [#allocation9], %s312
        %p314 = pneg %p104
        %p315 = pneg %p101
        %s316 = sand.u32 %s36, 1
        %s317 = scalar_lea.sflag [#allocation13], %s316
        %s318 = sand.u32 %s119, 1
        %s319 = smul.addr %s318, 8
        %s320 = scalar_lea.vmem [#allocation12], %s319
        %p321 = pneg %p132
        %p322 = pneg %p129
        %s323 = sand.u32 %s36, 1
        %s324 = scalar_lea.sflag [#allocation13], %s323
        %s325 = sand.u32 %s147, 1
        %s326 = smul.addr %s325, 8
        %s327 = scalar_lea.vmem [#allocation14], %s326
        %p328 = pneg %p160
        %p329 = pneg %p157
        %p330 = pneg %p188
        %p331 = pneg %p185
        %s332 = sand.u32 %s175, 1
        %s333 = scalar_lea.sflag [#allocation11], %s332
        %s334 = sand.u32 %s175, 1
        %s335 = smul.addr %s334, 8
        %s336 = scalar_lea.vmem [#allocation15], %s335
        %p337 = scmp.lt.s32.totalorder %s41, 1
        %s338 = scalar_select %p337, %s41, 1
        %s339 = scalar_lea.vmem %s2, %s338
        %p340 = scmp.eq.s32.totalorder %s43, 0
        // Predicated region
        $region49: #{tpu_custom_call.1} parent=35 // pred_check
          %p341 = pneg %p340
        $region50: #{tpu_custom_call.1} parent=35 // pred_check_branch
          %343 = sbr.rel (%p341) target = $region52
        $region51: #{tpu_custom_call.1} parent=35 // pred_region
          %v344 = vld [vmem:[%s281] sm:$0xff]
          %v345 = vmul.f32 %v344, 0.17677669
          %vm346 = vcmask 261120
          %347 = vst.msk [vmem:[#allocation2] sm:$0xff] %vm346, %v345
          %vm348 = vcmask 7168
          %349 = vst.msk [vmem:[#allocation3] sm:$0xff] %vm348, -inf
          %350 = vst.msk [vmem:[#allocation4] sm:$0xff] %vm348, 0.0
          %351 = vst.msk [vmem:[#allocation5] sm:$0xff] %vm346, 0.0
        $region52: #{tpu_custom_call.1} parent=35 // pred_fallthru
          _
        %s352 = smul.u32 %s43, 8
        %s353 = sld [smem:[#allocation7 + %s41]]
        %s354 = sld [smem:[#allocation8 + %s41]]
        %p355 = scmp.lt.s32.totalorder %s352, %s353
        %s356 = sadd.s32 %s352, 8
        %p357 = scmp.le.s32.totalorder %s356, %s354
        %p358 = pnand %p355, %p357
        %p359 = pneg %p358
        // Predicated region
        $region53: #{tpu_custom_call.1} parent=35 // pred_check
          _
        $region54: #{tpu_custom_call.1} parent=35 // pred_check_branch
          %361 = sbr.rel (%p358) target = $region56
        $region55: #{tpu_custom_call.1} parent=35 // pred_region
          %v362 = vld [vmem:[#allocation2] sm:$0xff]
          %v363 = vld [vmem:[%s290] sm:$0xff]
          %v364 = vld [vmem:[%s299] sm:$0xff]
          %vm365 = vcmask 261120
          %v367 = vsel %vm365, %v362, 0
          %v370 = vsel %vm365, %v363, 0
          %372 = vmatprep.subr.mxu0 0.0
          %373 = vmatpush1.xpose.msra.mxu0 0.0
          %374 = vmatprep.subr.mxu0 0.0
          %375 = vmatpush1.xpose.msra.mxu0 0.0
          %376 = vmatprep.subr.mxu0 0.0
          %377 = vmatpush1.xpose.msra.mxu0 0.0
          %378 = vmatprep.subr.mxu0 0.0
          %379 = vmatpush1.xpose.msra.mxu0 0.0
          %380 = vmatprep.subr.mxu0 0.0
          %381 = vmatpush1.xpose.msra.mxu0 0.0
          %382 = vmatprep.subr.mxu0 0.0
          %383 = vmatpush1.xpose.msra.mxu0 0.0
          %384 = vmatprep.subr.mxu0 0.0
          %385 = vmatpush1.xpose.msra.mxu0 0.0
          %386 = vmatprep.subr.mxu0 0.0
          %387 = vmatpush1.xpose.msra.mxu0 0.0
          %388 = vmatprep.subr.mxu0 0.0
          %389 = vmatpush1.xpose.msra.mxu0 0.0
          %390 = vmatprep.subr.mxu0 0.0
          %391 = vmatpush1.xpose.msra.mxu0 0.0
          %392 = vmatprep.subr.mxu0 0.0
          %393 = vmatpush1.xpose.msra.mxu0 0.0
          %394 = vmatprep.subr.mxu0 0.0
          %395 = vmatpush1.xpose.msra.mxu0 0.0
          %396 = vmatprep.subr.mxu0 0.0
          %397 = vmatpush1.xpose.msra.mxu0 0.0
          %398 = vmatprep.subr.mxu0 0.0
          %399 = vmatpush1.xpose.msra.mxu0 0.0
          %400 = vmatprep.subr.mxu0 0.0
          %401 = vmatpush1.xpose.msra.mxu0 0.0
          %402 = vmatprep.subr.mxu0 0.0
          %403 = vmatpush1.xpose.msra.mxu0 %v370
          %404 = vmatprep.subr.mxu0 0.0
          %405 = vmatpush2.xpose.msra.mxu0 0.0
          %406 = vmatprep.subr.mxu0 0.0
          %407 = vmatpush2.xpose.msra.mxu0 0.0
          %408 = vmatprep.subr.mxu0 0.0
          %409 = vmatpush2.xpose.msra.mxu0 0.0
          %410 = vmatprep.subr.mxu0 0.0
          %411 = vmatpush2.xpose.msra.mxu0 0.0
          %412 = vmatprep.subr.mxu0 0.0
          %413 = vmatpush2.xpose.msra.mxu0 0.0
          %414 = vmatprep.subr.mxu0 0.0
          %415 = vmatpush2.xpose.msra.mxu0 0.0
          %416 = vmatprep.subr.mxu0 0.0
          %417 = vmatpush2.xpose.msra.mxu0 0.0
          %418 = vmatprep.subr.mxu0 0.0
          %419 = vmatpush2.xpose.msra.mxu0 0.0
          %420 = vmatprep.subr.mxu0 0.0
          %421 = vmatpush2.xpose.msra.mxu0 0.0
          %422 = vmatprep.subr.mxu0 0.0
          %423 = vmatpush2.xpose.msra.mxu0 0.0
          %424 = vmatprep.subr.mxu0 0.0
          %425 = vmatpush2.xpose.msra.mxu0 0.0
          %426 = vmatprep.subr.mxu0 0.0
          %427 = vmatpush2.xpose.msra.mxu0 0.0
          %428 = vmatprep.subr.mxu0 0.0
          %429 = vmatpush2.xpose.msra.mxu0 0.0
          %430 = vmatprep.subr.mxu0 0.0
          %431 = vmatpush2.xpose.msra.mxu0 0.0
          %432 = vmatprep.subr.mxu0 0.0
          %433 = vmatpush2.xpose.msra.mxu0 0.0
          %434 = vmatprep.subr.mxu0 0.0
          %435 = vmatpush2.xpose.msra.mxu0 0.0
          %436 = vmatprep.mubr.f32.mxu0 0.0
          %437 = vmatmul.mubr.f32.gmra.mxu0 %v367
          %v438 = vpop.f32.mrf.mxu0
          %v439 = vadd.f32 0.0, %v438
          %v440 = vpop.f32.mrf.mxu0
          %441 = vdwg.mxu0
          %v442 = vld [vmem:[#allocation3] sm:$0xff]
          %vm443 = vcmask 64512
          %v444 = vsel %vm443, %v439, -inf
          %445 = vmax.xlane.f32.xlu0 %v444
          %v446 = vpop.xlane.xlu0 %445
          %v447 = vmax.f32 %v442, %v446
          %v448 = vsub.f32 %v442, %v447
          %v449 = vmul.f32 %v448, 1.442695
          %v450 = vpow.pop %v449
          %452 = vset.pattern.permute.xlu0 0
          %453 = vperm.xlu0 %452, %v447
          %v454 = vpop.permute.xlu0 %453
          %v456 = vsub.f32 %v439, %v454
          %v457 = vmul.f32 %v456, 1.442695
          %v458 = vpow.pop %v457
          %v459 = vld [vmem:[#allocation4] sm:$0xff]
          %v460 = vmul.f32 %v450, %v459
          %v461 = vsel %vm443, %v458, 0.0
          %462 = vadd.xlane.f32.xlu0 %v461
          %v463 = vpop.xlane.xlu0 %462
          %v464 = vadd.f32 %v460, %v463
          %vm465 = vcmask 7168
          %466 = vst.msk [vmem:[#allocation4] sm:$0xff] %vm465, %v464
          %v468 = vsel %vm443, %v458, 0
          %470 = vmatprep.subr.mxu0 0.0
          %471 = vmatpush1.msra.mxu0 0.0
          %472 = vmatprep.subr.mxu0 0.0
          %473 = vmatpush1.msra.mxu0 0.0
          %474 = vmatprep.subr.mxu0 0.0
          %475 = vmatpush1.msra.mxu0 0.0
          %476 = vmatprep.subr.mxu0 0.0
          %477 = vmatpush1.msra.mxu0 0.0
          %478 = vmatprep.subr.mxu0 0.0
          %479 = vmatpush1.msra.mxu0 0.0
          %480 = vmatprep.subr.mxu0 0.0
          %481 = vmatpush1.msra.mxu0 0.0
          %482 = vmatprep.subr.mxu0 0.0
          %483 = vmatpush1.msra.mxu0 0.0
          %484 = vmatprep.subr.mxu0 0.0
          %485 = vmatpush1.msra.mxu0 0.0
          %486 = vmatprep.subr.mxu0 0.0
          %487 = vmatpush1.msra.mxu0 0.0
          %488 = vmatprep.subr.mxu0 0.0
          %489 = vmatpush1.msra.mxu0 0.0
          %490 = vmatprep.subr.mxu0 0.0
          %491 = vmatpush1.msra.mxu0 0.0
          %492 = vmatprep.subr.mxu0 0.0
          %493 = vmatpush1.msra.mxu0 0.0
          %494 = vmatprep.subr.mxu0 0.0
          %495 = vmatpush1.msra.mxu0 0.0
          %496 = vmatprep.subr.mxu0 0.0
          %497 = vmatpush1.msra.mxu0 0.0
          %498 = vmatprep.subr.mxu0 0.0
          %499 = vmatpush1.msra.mxu0 0.0
          %500 = vmatprep.subr.mxu0 0.0
          %501 = vmatpush1.msra.mxu0 %v364
          %502 = vmatprep.subr.mxu0 0.0
          %503 = vmatpush2.msra.mxu0 0.0
          %504 = vmatprep.subr.mxu0 0.0
          %505 = vmatpush2.msra.mxu0 0.0
          %506 = vmatprep.subr.mxu0 0.0
          %507 = vmatpush2.msra.mxu0 0.0
          %508 = vmatprep.subr.mxu0 0.0
          %509 = vmatpush2.msra.mxu0 0.0
          %510 = vmatprep.subr.mxu0 0.0
          %511 = vmatpush2.msra.mxu0 0.0
          %512 = vmatprep.subr.mxu0 0.0
          %513 = vmatpush2.msra.mxu0 0.0
          %514 = vmatprep.subr.mxu0 0.0
          %515 = vmatpush2.msra.mxu0 0.0
          %516 = vmatprep.subr.mxu0 0.0
          %517 = vmatpush2.msra.mxu0 0.0
          %518 = vmatprep.subr.mxu0 0.0
          %519 = vmatpush2.msra.mxu0 0.0
          %520 = vmatprep.subr.mxu0 0.0
          %521 = vmatpush2.msra.mxu0 0.0
          %522 = vmatprep.subr.mxu0 0.0
          %523 = vmatpush2.msra.mxu0 0.0
          %524 = vmatprep.subr.mxu0 0.0
          %525 = vmatpush2.msra.mxu0 0.0
          %526 = vmatprep.subr.mxu0 0.0
          %527 = vmatpush2.msra.mxu0 0.0
          %528 = vmatprep.subr.mxu0 0.0
          %529 = vmatpush2.msra.mxu0 0.0
          %530 = vmatprep.subr.mxu0 0.0
          %531 = vmatpush2.msra.mxu0 0.0
          %532 = vmatprep.subr.mxu0 0.0
          %533 = vmatpush2.msra.mxu0 0.0
          %534 = vmatprep.mubr.f32.mxu0 0.0
          %535 = vmatmul.mubr.f32.gmra.mxu0 %v468
          %v536 = vpop.f32.mrf.mxu0
          %v537 = vadd.f32 0.0, %v536
          %v538 = vpop.f32.mrf.mxu0
          %539 = vdwg.mxu0
          %v540 = vld [vmem:[#allocation5] sm:$0xff]
          %542 = vset.pattern.permute.xlu0 0
          %543 = vperm.xlu0 %542, %v450
          %v544 = vpop.permute.xlu0 %543
          %v546 = vmul.f32 %v544, %v540
          %v547 = vadd.f32 %v546, %v537
          %548 = vst.msk [vmem:[#allocation5] sm:$0xff] %vm365, %v547
          %549 = vst.msk [vmem:[#allocation3] sm:$0xff] %vm465, %v447
        $region56: #{tpu_custom_call.1} parent=35 // pred_fallthru
          _
        %p550 = scmp.gt.s32.totalorder %s356, %s354
        %p551 = pnand %p355, %p550
        %p552 = pneg %p551
        // Predicated region
        $region57: #{tpu_custom_call.1} parent=35 // pred_check
          _
        $region58: #{tpu_custom_call.1} parent=35 // pred_check_branch
          %554 = sbr.rel (%p551) target = $region60
        $region59: #{tpu_custom_call.1} parent=35 // pred_region
          %v555 = vld [vmem:[#allocation2] sm:$0xff]
          %v556 = vld [vmem:[%s290] sm:$0xff]
          %v557 = vld [vmem:[%s299] sm:$0xff]
          %vm558 = vcmask 261120
          %v560 = vsel %vm558, %v555, 0
          %v563 = vsel %vm558, %v556, 0
          %565 = vmatprep.subr.mxu0 0.0
          %566 = vmatpush1.xpose.msra.mxu0 0.0
          %567 = vmatprep.subr.mxu0 0.0
          %568 = vmatpush1.xpose.msra.mxu0 0.0
          %569 = vmatprep.subr.mxu0 0.0
          %570 = vmatpush1.xpose.msra.mxu0 0.0
          %571 = vmatprep.subr.mxu0 0.0
          %572 = vmatpush1.xpose.msra.mxu0 0.0
          %573 = vmatprep.subr.mxu0 0.0
          %574 = vmatpush1.xpose.msra.mxu0 0.0
          %575 = vmatprep.subr.mxu0 0.0
          %576 = vmatpush1.xpose.msra.mxu0 0.0
          %577 = vmatprep.subr.mxu0 0.0
          %578 = vmatpush1.xpose.msra.mxu0 0.0
          %579 = vmatprep.subr.mxu0 0.0
          %580 = vmatpush1.xpose.msra.mxu0 0.0
          %581 = vmatprep.subr.mxu0 0.0
          %582 = vmatpush1.xpose.msra.mxu0 0.0
          %583 = vmatprep.subr.mxu0 0.0
          %584 = vmatpush1.xpose.msra.mxu0 0.0
          %585 = vmatprep.subr.mxu0 0.0
          %586 = vmatpush1.xpose.msra.mxu0 0.0
          %587 = vmatprep.subr.mxu0 0.0
          %588 = vmatpush1.xpose.msra.mxu0 0.0
          %589 = vmatprep.subr.mxu0 0.0
          %590 = vmatpush1.xpose.msra.mxu0 0.0
          %591 = vmatprep.subr.mxu0 0.0
          %592 = vmatpush1.xpose.msra.mxu0 0.0
          %593 = vmatprep.subr.mxu0 0.0
          %594 = vmatpush1.xpose.msra.mxu0 0.0
          %595 = vmatprep.subr.mxu0 0.0
          %596 = vmatpush1.xpose.msra.mxu0 %v563
          %597 = vmatprep.subr.mxu0 0.0
          %598 = vmatpush2.xpose.msra.mxu0 0.0
          %599 = vmatprep.subr.mxu0 0.0
          %600 = vmatpush2.xpose.msra.mxu0 0.0
          %601 = vmatprep.subr.mxu0 0.0
          %602 = vmatpush2.xpose.msra.mxu0 0.0
          %603 = vmatprep.subr.mxu0 0.0
          %604 = vmatpush2.xpose.msra.mxu0 0.0
          %605 = vmatprep.subr.mxu0 0.0
          %606 = vmatpush2.xpose.msra.mxu0 0.0
          %607 = vmatprep.subr.mxu0 0.0
          %608 = vmatpush2.xpose.msra.mxu0 0.0
          %609 = vmatprep.subr.mxu0 0.0
          %610 = vmatpush2.xpose.msra.mxu0 0.0
          %611 = vmatprep.subr.mxu0 0.0
          %612 = vmatpush2.xpose.msra.mxu0 0.0
          %613 = vmatprep.subr.mxu0 0.0
          %614 = vmatpush2.xpose.msra.mxu0 0.0
          %615 = vmatprep.subr.mxu0 0.0
          %616 = vmatpush2.xpose.msra.mxu0 0.0
          %617 = vmatprep.subr.mxu0 0.0
          %618 = vmatpush2.xpose.msra.mxu0 0.0
          %619 = vmatprep.subr.mxu0 0.0
          %620 = vmatpush2.xpose.msra.mxu0 0.0
          %621 = vmatprep.subr.mxu0 0.0
          %622 = vmatpush2.xpose.msra.mxu0 0.0
          %623 = vmatprep.subr.mxu0 0.0
          %624 = vmatpush2.xpose.msra.mxu0 0.0
          %625 = vmatprep.subr.mxu0 0.0
          %626 = vmatpush2.xpose.msra.mxu0 0.0
          %627 = vmatprep.subr.mxu0 0.0
          %628 = vmatpush2.xpose.msra.mxu0 0.0
          %629 = vmatprep.mubr.f32.mxu0 0.0
          %630 = vmatmul.mubr.f32.gmra.mxu0 %v560
          %v631 = vpop.f32.mrf.mxu0
          %v632 = vadd.f32 0.0, %v631
          %v633 = vpop.f32.mrf.mxu0
          %634 = vdwg.mxu0
          %v635 = vld [vmem:[%s339] sm:$0x1]
          %v636 = vlaneseq
          %v637 = vand.u32 %v636, 127
          %v638 = vstv %s352
          %v639 = vadd.s32 %v637, %v638
          %v640 = vlaneseq
          %v641 = vshrl.u32 %v640, 7
          %v642 = vsub.s32 0, %v641
          %v643 = vrot.slane %v635, %v642
          %644 = vset.pattern.permute.xlu0 0
          %645 = vperm.xlu0 %644, %v643
          %v646 = vpop.permute.xlu0 %645
          %vm647 = vcmp.lt.s32.totalorder %v639, %v646
          %v648 = vsel %vm647, %v632, -1000000.0
          %v649 = vld [vmem:[#allocation3] sm:$0xff]
          %vm650 = vcmask 64512
          %v651 = vsel %vm650, %v648, -inf
          %652 = vmax.xlane.f32.xlu0 %v651
          %v653 = vpop.xlane.xlu0 %652
          %v654 = vmax.f32 %v649, %v653
          %v655 = vsub.f32 %v649, %v654
          %v656 = vmul.f32 %v655, 1.442695
          %v657 = vpow.pop %v656
          %659 = vset.pattern.permute.xlu0 0
          %660 = vperm.xlu0 %659, %v654
          %v661 = vpop.permute.xlu0 %660
          %v663 = vsub.f32 %v648, %v661
          %v664 = vmul.f32 %v663, 1.442695
          %v665 = vpow.pop %v664
          %v666 = vld [vmem:[#allocation4] sm:$0xff]
          %v667 = vmul.f32 %v657, %v666
          %v668 = vsel %vm650, %v665, 0.0
          %669 = vadd.xlane.f32.xlu0 %v668
          %v670 = vpop.xlane.xlu0 %669
          %v671 = vadd.f32 %v667, %v670
          %vm672 = vcmask 7168
          %673 = vst.msk [vmem:[#allocation4] sm:$0xff] %vm672, %v671
          %v675 = vsel %vm650, %v665, 0
          %677 = vmatprep.subr.mxu0 0.0
          %678 = vmatpush1.msra.mxu0 0.0
          %679 = vmatprep.subr.mxu0 0.0
          %680 = vmatpush1.msra.mxu0 0.0
          %681 = vmatprep.subr.mxu0 0.0
          %682 = vmatpush1.msra.mxu0 0.0
          %683 = vmatprep.subr.mxu0 0.0
          %684 = vmatpush1.msra.mxu0 0.0
          %685 = vmatprep.subr.mxu0 0.0
          %686 = vmatpush1.msra.mxu0 0.0
          %687 = vmatprep.subr.mxu0 0.0
          %688 = vmatpush1.msra.mxu0 0.0
          %689 = vmatprep.subr.mxu0 0.0
          %690 = vmatpush1.msra.mxu0 0.0
          %691 = vmatprep.subr.mxu0 0.0
          %692 = vmatpush1.msra.mxu0 0.0
          %693 = vmatprep.subr.mxu0 0.0
          %694 = vmatpush1.msra.mxu0 0.0
          %695 = vmatprep.subr.mxu0 0.0
          %696 = vmatpush1.msra.mxu0 0.0
          %697 = vmatprep.subr.mxu0 0.0
          %698 = vmatpush1.msra.mxu0 0.0
          %699 = vmatprep.subr.mxu0 0.0
          %700 = vmatpush1.msra.mxu0 0.0
          %701 = vmatprep.subr.mxu0 0.0
          %702 = vmatpush1.msra.mxu0 0.0
          %703 = vmatprep.subr.mxu0 0.0
          %704 = vmatpush1.msra.mxu0 0.0
          %705 = vmatprep.subr.mxu0 0.0
          %706 = vmatpush1.msra.mxu0 0.0
          %707 = vmatprep.subr.mxu0 0.0
          %708 = vmatpush1.msra.mxu0 %v557
          %709 = vmatprep.subr.mxu0 0.0
          %710 = vmatpush2.msra.mxu0 0.0
          %711 = vmatprep.subr.mxu0 0.0
          %712 = vmatpush2.msra.mxu0 0.0
          %713 = vmatprep.subr.mxu0 0.0
          %714 = vmatpush2.msra.mxu0 0.0
          %715 = vmatprep.subr.mxu0 0.0
          %716 = vmatpush2.msra.mxu0 0.0
          %717 = vmatprep.subr.mxu0 0.0
          %718 = vmatpush2.msra.mxu0 0.0
          %719 = vmatprep.subr.mxu0 0.0
          %720 = vmatpush2.msra.mxu0 0.0
          %721 = vmatprep.subr.mxu0 0.0
          %722 = vmatpush2.msra.mxu0 0.0
          %723 = vmatprep.subr.mxu0 0.0
          %724 = vmatpush2.msra.mxu0 0.0
          %725 = vmatprep.subr.mxu0 0.0
          %726 = vmatpush2.msra.mxu0 0.0
          %727 = vmatprep.subr.mxu0 0.0
          %728 = vmatpush2.msra.mxu0 0.0
          %729 = vmatprep.subr.mxu0 0.0
          %730 = vmatpush2.msra.mxu0 0.0
          %731 = vmatprep.subr.mxu0 0.0
          %732 = vmatpush2.msra.mxu0 0.0
          %733 = vmatprep.subr.mxu0 0.0
          %734 = vmatpush2.msra.mxu0 0.0
          %735 = vmatprep.subr.mxu0 0.0
          %736 = vmatpush2.msra.mxu0 0.0
          %737 = vmatprep.subr.mxu0 0.0
          %738 = vmatpush2.msra.mxu0 0.0
          %739 = vmatprep.subr.mxu0 0.0
          %740 = vmatpush2.msra.mxu0 0.0
          %741 = vmatprep.mubr.f32.mxu0 0.0
          %742 = vmatmul.mubr.f32.gmra.mxu0 %v675
          %v743 = vpop.f32.mrf.mxu0
          %v744 = vadd.f32 0.0, %v743
          %v745 = vpop.f32.mrf.mxu0
          %746 = vdwg.mxu0
          %v747 = vld [vmem:[#allocation5] sm:$0xff]
          %749 = vset.pattern.permute.xlu0 0
          %750 = vperm.xlu0 %749, %v657
          %v751 = vpop.permute.xlu0 %750
          %v753 = vmul.f32 %v751, %v747
          %v754 = vadd.f32 %v753, %v744
          %755 = vst.msk [vmem:[#allocation5] sm:$0xff] %vm558, %v754
          %756 = vst.msk [vmem:[#allocation3] sm:$0xff] %vm672, %v654
        $region60: #{tpu_custom_call.1} parent=35 // pred_fallthru
          _
        // Predicated region
        $region61: #{tpu_custom_call.1} parent=35 // pred_check
          %p757 = pneg %p340
        $region62: #{tpu_custom_call.1} parent=35 // pred_check_branch
          %759 = sbr.rel (%p757) target = $region64
        $region63: #{tpu_custom_call.1} parent=35 // pred_region
          %v760 = vld [vmem:[#allocation5] sm:$0xff]
          %v761 = vld [vmem:[#allocation4] sm:$0xff]
          %763 = vset.pattern.permute.xlu0 0
          %764 = vperm.xlu0 %763, %v761
          %v765 = vpop.permute.xlu0 %764
          %v767 = vrcp.pop %v765
          %v768 = vmul.f32 %v760, %v767
          %vm769 = vcmask 261120
          %770 = vst.msk [vmem:[%s336] sm:$0xff] %vm769, %v768
        $region64: #{tpu_custom_call.1} parent=35 // pred_fallthru
          _
        %s771 = sand.u32 %s175, 1
        %s772 = scalar_lea.sflag [#allocation11], %s771
        %s773 = sand.u32 %s175, 1
        %s774 = smul.addr %s773, 8
        %s775 = scalar_lea.vmem [#allocation15], %s774
        // Predicated region
        $region65: #{tpu_custom_call.1} parent=35 // pred_check
          %p776 = pneg %p185
        $region66: #{tpu_custom_call.1} parent=35 // pred_check_branch
          %778 = sbr.rel (%p776) target = $region68
        $region67: #{tpu_custom_call.1} parent=35 // pred_region
          %s780 = ssub.s32 128, 128
          %781 = vsyncadd %s772, %s780
          %s782 = sadd.s32 %s42, %s41
          %s783 = smul.addr %s782, 128
          %s784 = scalar_lea.hbm %s6, %s783
          %s786 = sshll.u32 %s775, 4
          %s787 = int_to_ptr.vmem [resolvable:$true] %s786
          %789 = dma.vmem_to_hbm [thread:$0]  %s787, 128, %s784, %s772
        $region68: #{tpu_custom_call.1} parent=35 // pred_fallthru
          _
      $region36: #{tpu_custom_call.1} parent=5 // pred_fallthru
        _
      %p790 = scmp.le.s32.totalorder 2, %s31
      // Predicated region
      $region69: #{tpu_custom_call.1} parent=5 // pred_check
        %p791 = pneg %p790
      $region70: #{tpu_custom_call.1} parent=5 // pred_check_branch
        %793 = sbr.rel (%p791) target = $region72
      $region71: #{tpu_custom_call.1} parent=5 // pred_region
        %s794 = ssub.s32 %s31, 2
        // Predicated region
        $region73: #{tpu_custom_call.1} parent=71 // pred_check
          %p795 = pneg %p191
        $region74: #{tpu_custom_call.1} parent=71 // pred_check_branch
          %797 = sbr.rel (%p795) target = $region76
        $region75: #{tpu_custom_call.1} parent=71 // pred_region
          %s798 = sand.u32 %s176, 1
          %s799 = scalar_lea.sflag [#allocation11], %s798
          %s800 = sand.u32 %s176, 1
          %s801 = smul.addr %s800, 8
          %s802 = scalar_lea.vmem [#allocation15], %s801
          %803 = dma.done %s799, 128
        $region76: #{tpu_custom_call.1} parent=71 // pred_fallthru
          _
      $region72: #{tpu_custom_call.1} parent=5 // pred_fallthru
        _
    $region6: #{tpu_custom_call.1} parent=1 // loop_footer
      %s35 = sadd.s32 1, %s31
    $region7: #{tpu_custom_call.1} parent=1 // loop_footer_branch
      %30 = sbr.rel target = $region3
    $region8: #{tpu_custom_call.1} parent=1 // loop_exit
      _
    %804 = vsyncpa [#allocation10], 1
    %s805 = scalar_lea.sflag [#allocation10], 1
    %806 = vsyncpa %s805, 1
    %807 = vsyncpa [#allocation13], 1
    %s808 = scalar_lea.sflag [#allocation13], 1
    %809 = vsyncpa %s808, 1
    %810 = vsyncpa [#allocation11], 1
    %s811 = scalar_lea.sflag [#allocation11], 1
    %812 = vsyncpa %s811, 1

</llo_original>
